<compile_context>
chip_gen: v6e
topology: v6e:2x2x1
jax: 0.10.0
libtpu: 0.0.40
codegen_flags: <defaults>
</compile_context>

<pallas_src>
import math
from functools import partial

import jax
import jax.numpy as jnp
from jax.experimental import pallas as pl
from jax.experimental.pallas import tpu as pltpu


_TILE_BYTES_TARGET = 2 * 1024 * 1024      # ~2 MiB per tile
_VMEM_LIMIT_BYTES = 32 * 1024 * 1024      # safe on v5e / v6e / v7x


def _copy_kernel(x_ref, o_ref):
    # One unmasked, lane-dense full-block store per grid step.
    o_ref[...] = x_ref[...]


def _resolve_target(args, n_flat):
    """Resolve a single -1 wildcard the way torch.Tensor.view does."""
    dims = [int(d) for d in args]
    if dims.count(-1) > 1:
        raise ValueError("only one dimension may be -1")
    if -1 in dims:
        known = math.prod(d for d in dims if d != -1)
        if known == 0 or n_flat % known != 0:
            raise ValueError(f"cannot view {n_flat} elements as {tuple(args)}")
        dims[dims.index(-1)] = n_flat // known
    if math.prod(dims) != n_flat:
        raise ValueError(f"cannot view {n_flat} elements as {tuple(args)}")
    return tuple(dims)


def _sublane_multiple(itemsize):
    # f32 -> 8, bf16 -> 16, int8/fp8 -> 32 (sub-32-bit dtypes pack along sublanes).
    return max(8, 32 // itemsize)


def _choose_lanes(total, sm):
    """Widest 128-multiple lane tile dividing the payload, preferring one that
    still leaves at least one full sublane group of rows."""
    widest = None
    for cand in (2048, 1024, 512, 256, 128):
        if total % cand != 0:
            continue
        if widest is None:
            widest = cand
        if total // cand >= sm:
            return cand
    return widest


def _choose_row_block(n_rows, lanes, itemsize, sm):
    """Byte-budgeted, dtype-aware row block; >= 2 grid points when possible."""
    if n_rows <= sm:
        return n_rows                      # full dim (exempt from 8-multiple rule)
    budget_rows = max(sm, (_TILE_BYTES_TARGET // (lanes * itemsize)) // sm * sm)
    rb = min(budget_rows, (n_rows // sm) * sm)
    # v7x has 2 TensorCores: keep at least 2 grid points on the parallel axis.
    if 2 * rb > n_rows and n_rows >= 2 * sm:
        rb = max(sm, (((n_rows + 1) // 2) // sm) * sm)
    return rb


def _plan_flat_copy(batch, n, itemsize):
    """Return (rows, cols, row_block) for the lane-dense flat copy."""
    total = batch * n
    sm = _sublane_multiple(itemsize)
    if total % 128 == 0:
        lanes = _choose_lanes(total, sm)
        rows = total // lanes
        return rows, lanes, _choose_row_block(rows, lanes, itemsize, sm)
    # TODO(synk): payloads that are not a multiple of 128 elements fall back to
    # a single whole-array block; fine for small shapes, not for > VMEM arrays.
    return batch, max(n, 1), batch


@partial(jax.jit, static_argnames=("args", "donate"))
def nnn_reshape_forward(x, args, donate=False):
    """Pallas implementation of NnnReshape(*args).forward(x)."""
    batch = x.shape[0]
    n = math.prod(x.shape[1:])
    out_dims = _resolve_target(args, n)
    out_shape = (batch,) + out_dims

    total = batch * n
    if total == 0:
        return x.reshape(out_shape)        # nothing to copy

    itemsize = jnp.dtype(x.dtype).itemsize
    rows, cols, rb = _plan_flat_copy(batch, n, itemsize)

    # Row-major flatten to a lane-dense 2-D slab: metadata-only, no data moved.
    x2d = x.reshape(rows, cols)

    y2d = pl.pallas_call(
        _copy_kernel,
        out_shape=jax.ShapeDtypeStruct((rows, cols), x.dtype),
        grid=(pl.cdiv(rows, rb),),
        in_specs=[pl.BlockSpec((rb, cols), lambda i: (i, 0))],
        out_specs=pl.BlockSpec((rb, cols), lambda i: (i, 0)),
        compiler_params=pltpu.CompilerParams(
            dimension_semantics=("parallel",),
            vmem_limit_bytes=_VMEM_LIMIT_BYTES),
        cost_estimate=pl.CostEstimate(
            flops=0, transcendentals=0,
            bytes_accessed=2 * total * itemsize),
        input_output_aliases=({0: 0} if donate else {}),
    )(x2d)

    # Attach the requested view shape: metadata-only again.
    return y2d.reshape(out_shape)


if __name__ == "__main__":
    key = jax.random.PRNGKey(0)
    B, C, H, W = 2, 4, 16, 16
    x = jax.random.normal(key, (B, C, H, W), dtype=jnp.float32)

    # NnnReshape(1024): flatten each batch element -> lane-dense copy.
    target = (C * H * W,)
    out = nnn_reshape_forward(x, target)
    jax.block_until_ready(out)
    ref = x.reshape((B,) + target)
    assert out.shape == (B,) + target, out.shape
    assert bool(jnp.array_equal(out, ref)), "mismatch vs reference (flatten)"

    # NnnReshape(8, -1, 16): exercises the -1 wildcard and a multi-dim view.
    target2 = (8, -1, 16)
    out2 = nnn_reshape_forward(x, target2)
    jax.block_until_ready(out2)
    ref2 = x.reshape(B, 8, 8, 16)
    assert out2.shape == (B, 8, 8, 16), out2.shape
    assert bool(jnp.array_equal(out2, ref2)), "mismatch vs reference (view)"

    # bf16 path exercises the dtype-aware (16-row) sublane multiple.
    xb = x.astype(jnp.bfloat16)
    out3 = nnn_reshape_forward(xb, (-1,))
    jax.block_until_ready(out3)
    assert out3.shape == (B, C * H * W), out3.shape
    assert bool(jnp.array_equal(out3, xb.reshape(B, -1))), "mismatch (bf16)"

    print("KERNEL_OK")
</pallas_src>

<mosaic_0001>
module attributes {stable_mosaic.version = 11 : i64} {
  func.func @_copy_kernel(%arg0: i32, %arg1: memref<8x256xf32, #tpu.memory_space<vmem>>, %arg2: memref<8x256xf32, #tpu.memory_space<vmem>>) attributes {dimension_semantics = [#tpu.dimension_semantics<parallel>], iteration_bounds = array<i64: 1>, scalar_prefetch = 0 : i64, scratch_operands = 0 : i64, tpu.core_type = #tpu.core_type<tc>, window_params = [{transform_indices = @transform_0, window_bounds = array<i64: 8, 256>}, {transform_indices = @transform_1, window_bounds = array<i64: 8, 256>}]} {
    %c0 = arith.constant 0 : index
    %c0_0 = arith.constant 0 : index
    %0 = vector.load %arg1[%c0, %c0_0] : memref<8x256xf32, #tpu.memory_space<vmem>>, vector<8x256xf32>
    %c0_1 = arith.constant 0 : index
    %c0_2 = arith.constant 0 : index
    %1 = vector.load %arg2[%c0_1, %c0_2] : memref<8x256xf32, #tpu.memory_space<vmem>>, vector<8x256xf32>
    tpu.vector_store %arg2[%c0_1, %c0_2], %0 {strides = array<i32>} : memref<8x256xf32, #tpu.memory_space<vmem>>, vector<8x256xf32>,
    return
  }
  func.func @transform_0(%arg0: i32) -> (i32, i32) {
    %c0_i32 = arith.constant 0 : i32
    %c0_i32_0 = arith.constant 0 : i32
    return %arg0, %c0_i32 : i32, i32
  }
  func.func @transform_1(%arg0: i32) -> (i32, i32) {
    %c0_i32 = arith.constant 0 : i32
    %c0_i32_0 = arith.constant 0 : i32
    return %arg0, %c0_i32 : i32, i32
  }
}

</mosaic_0001>

<llo_original>
// kernel: nnn_reshape_forward.1
$region0: #{nnn_reshape_forward.1}
  #allocation0 [shape = 'u32[]', space=smem, size = 0x4, offset = 0x4, fixed_abs, tag = 'smem constant byte address 0x4 - core index']
  #allocation1 [shape = 'u32[144,128]{1,0:T(1,128)}', space=vmem, size = 0x12000, scoped, tag = 'internal scratch']
  %s0 = inlined_call_operand.vmem [shape: f32[8,256], index: 0, kind: input, shape index: {}]
  %s1 = inlined_call_operand.vmem [shape: f32[8,256], index: 1, kind: output, shape index: {}]
  %s2 = sld [smem:[#allocation0]]
  $region14: #{nnn_reshape_forward.1} parent=0
    _
  %s4 = ssub.s32 1, %s2
  %s5 = scalar_select 0, %s4, %s2
  // Predicated region
  $region2: #{nnn_reshape_forward.1} parent=0 // pred_check
    _
  $region3: #{nnn_reshape_forward.1} parent=0 // pred_check_branch
    %7 = sbr.rel (0) target = $region5
  $region4: #{nnn_reshape_forward.1} parent=0 // pred_region
    _
  $region5: #{nnn_reshape_forward.1} parent=0 // pred_fallthru
    _
  %v8 = vld [vmem:[%s0] sm:$0xff]
  %v9 = vld [vmem:[%s0 + $0x8] sm:$0xff]
  %10 = vst [vmem:[%s1] sm:$0xff] %v8
  %11 = vst [vmem:[%s1 + $0x8] sm:$0xff] %v9
  // Predicated region
  $region6: #{nnn_reshape_forward.1} parent=0 // pred_check
    _
  $region7: #{nnn_reshape_forward.1} parent=0 // pred_check_branch
    %13 = sbr.rel (0) target = $region9
  $region8: #{nnn_reshape_forward.1} parent=0 // pred_region
    _
  $region9: #{nnn_reshape_forward.1} parent=0 // pred_fallthru
    _
  // Predicated region
  $region10: #{nnn_reshape_forward.1} parent=0 // pred_check
    _
  $region11: #{nnn_reshape_forward.1} parent=0 // pred_check_branch
    %15 = sbr.rel (0) target = $region13
  $region12: #{nnn_reshape_forward.1} parent=0 // pred_region
    _
  $region13: #{nnn_reshape_forward.1} parent=0 // pred_fallthru
    _

</llo_original>
